<compile_context>
chip_gen: v6e
topology: v6e:2x2x1
jax: 0.10.0
libtpu: 0.0.40
codegen_flags: <defaults>
</compile_context>

<pallas_src>
import functools

import jax
import jax.numpy as jnp
from jax.experimental import pallas as pl
from jax.experimental.pallas import tpu as pltpu


def _focal_loss_kernel(logits_ref, targets_ref, alpha_t_ref, out_ref,
                       *, gamma, n_total: int, tile_n: int):
    pid = pl.program_id(0)

    # Upcast per tile (HBM traffic stays in the caller's native dtype, e.g. bf16).
    logits = logits_ref[...].astype(jnp.float32)         # (TILE_N, C)
    tgt = targets_ref[...]                                # (TILE_N, 1) int32
    alpha_t = alpha_t_ref[...].astype(jnp.float32)        # (TILE_N, 1)
    tn, c = logits.shape

    # Target-class logit via a select + lane reduction (no materialized one-hot).
    col = jax.lax.broadcasted_iota(jnp.int32, (tn, c), 1)
    target_logit = jnp.sum(jnp.where(col == tgt, logits, 0.0),
                           axis=-1, keepdims=True)        # (TILE_N, 1)

    # Numerically stable logsumexp across classes.
    m = jnp.max(logits, axis=-1, keepdims=True)            # (TILE_N, 1)
    lse = m + jnp.log(jnp.sum(jnp.exp(logits - m), axis=-1, keepdims=True))
    ce = lse - target_logit                                 # (TILE_N, 1)

    pt = jnp.exp(-ce)
    u = jnp.maximum(1.0 - pt, 0.0)   # clamp: ce can round slightly negative
    # Modulating factor (1 - pt)**gamma.
    if float(gamma).is_integer() and gamma >= 0:
        g = int(gamma)
        if g == 0:
            mod = jnp.ones_like(u)
        else:
            mod = u
            for _ in range(g - 1):
                mod = mod * u
    else:
        mod = jnp.power(u, jnp.float32(gamma))
    f_loss = alpha_t * mod * ce                              # (TILE_N, 1)

    # Mask rows of the (possibly padded) last tile, then sum this tile.
    row = jax.lax.broadcasted_iota(jnp.int32, (tn, 1), 0)
    valid = (pid * tile_n + row) < n_total
    tile_sum = jnp.sum(jnp.where(valid, f_loss, 0.0))        # scalar

    # Lane-dense per-tile output block (unmasked vst); wrapper reads row 0, lane 0.
    out_ref[...] = jnp.full(out_ref.shape, tile_sum, dtype=jnp.float32)


def focal_loss(logits, targets, alpha=None, gamma=3, tile_n=None):
    """logits: (N, C) float; targets: (N,) int; alpha: None | scalar | (C,) float."""
    n, c = logits.shape
    targets_2d = targets.astype(jnp.int32).reshape(n, 1)

    # alpha[targets] gather moved out of the kernel (per-row column, tiny DMA).
    if alpha is None:
        alpha_t = jnp.ones((n, 1), jnp.float32)
    else:
        alpha_arr = jnp.asarray(alpha, jnp.float32)
        if alpha_arr.ndim == 0:
            alpha_t = jnp.full((n, 1), alpha_arr, jnp.float32)
        else:
            alpha_t = alpha_arr[targets_2d[:, 0]].reshape(n, 1)

    # --- Tile sizing: target ~2 MiB of input per step (amortizes per-step cost,
    # keeps f32 intermediates comfortably inside every generation's VMEM). -------
    itemsize = jnp.dtype(logits.dtype).itemsize
    if tile_n is None:
        target_block_bytes = 2 << 20
        tile_n = target_block_bytes // max(1, c * itemsize)
    tile_n = int(tile_n)
    if tile_n >= n:
        tile_n = n                            # single tile: block dims == array dims
    else:
        tile_n = max(8, (tile_n // 8) * 8)    # (8, 128)-rule: sublane-aligned tiles
    n_tiles = pl.cdiv(n, tile_n)

    # --- VMEM budget: double-buffered native-dtype input + ~3x f32 intermediates
    # (upcast logits, exp(logits - m), select temp) + side arrays + headroom. -----
    in_block = tile_n * c * itemsize
    f32_temps = 3 * tile_n * c * 4
    side = 2 * (tile_n * 4 + tile_n * 4) + 2 * (8 * 128 * 4)
    vmem_limit = int(min(max(2 * in_block + f32_temps + side + (2 << 20), 16 << 20),
                         48 << 20))           # <= 48 MiB: fits v7x 64 MiB/TC

    cost = pl.CostEstimate(
        flops=8 * n * c,
        transcendentals=n * c + 2 * n,
        bytes_accessed=n * c * itemsize + 8 * n + n_tiles * 8 * 128 * 4,
    )

    kernel = functools.partial(
        _focal_loss_kernel, gamma=gamma, n_total=int(n), tile_n=int(tile_n))

    partials = pl.pallas_call(
        kernel,
        out_shape=jax.ShapeDtypeStruct((n_tiles * 8, 128), jnp.float32),
        grid_spec=pltpu.PrefetchScalarGridSpec(
            num_scalar_prefetch=0,
            grid=(n_tiles,),
            in_specs=[
                pl.BlockSpec((tile_n, c), lambda i: (i, 0)),   # logits row tile
                pl.BlockSpec((tile_n, 1), lambda i: (i, 0)),   # targets
                pl.BlockSpec((tile_n, 1), lambda i: (i, 0)),   # alpha[targets]
            ],
            out_specs=pl.BlockSpec((8, 128), lambda i: (i, 0)),  # per-tile partial sum
        ),
        compiler_params=pltpu.CompilerParams(
            dimension_semantics=("parallel",),   # independent tiles -> both v7x TCs
            vmem_limit_bytes=vmem_limit,
        ),
        cost_estimate=cost,
    )(logits, targets_2d, alpha_t)

    # Tiny final reduction + mean in the wrapper (tree-sum, better precision too).
    return jnp.sum(partials[0::8, 0]) / jnp.float32(n)        # reduction='mean'


def _focal_loss_ref(logits, targets, alpha_per_class, gamma=3):
    lse = jax.scipy.special.logsumexp(logits, axis=-1)
    ce = lse - jnp.take_along_axis(logits, targets[:, None], axis=-1)[:, 0]
    pt = jnp.exp(-ce)
    alpha_t = alpha_per_class[targets]
    return jnp.mean(alpha_t * (1.0 - pt) ** gamma * ce)


if __name__ == "__main__":
    key = jax.random.PRNGKey(0)
    k_logits, k_tgt = jax.random.split(key)

    # Small, deterministic problem; tile_n=64 -> 4 row tiles with a ragged last
    # tile (8 valid rows), exercising the parallel multi-tile + masked path.
    N, C = 200, 16
    logits = jax.random.normal(k_logits, (N, C), dtype=jnp.float32) * 2.0
    targets = jax.random.randint(k_tgt, (N,), 0, C, dtype=jnp.int32)
    # Per-class alpha (the module supports a Tensor alpha; default scalar 1.0 also works).
    alpha = jnp.linspace(0.5, 1.5, C, dtype=jnp.float32)

    loss = focal_loss(logits, targets, alpha, gamma=3, tile_n=64)
    loss = jax.block_until_ready(loss)

    ref = _focal_loss_ref(logits, targets, alpha, gamma=3)
    assert jnp.allclose(loss, ref, rtol=1e-5, atol=1e-6), (loss, ref)

    print("KERNEL_OK")
</pallas_src>

<mosaic_0001>
module attributes {stable_mosaic.version = 11 : i64} {
  func.func @_focal_loss_kernel(%arg0: i32, %arg1: memref<64x16xf32, #tpu.memory_space<vmem>>, %arg2: memref<64x1xi32, #tpu.memory_space<vmem>>, %arg3: memref<64x1xf32, #tpu.memory_space<vmem>>, %arg4: memref<8x128xf32, #tpu.memory_space<vmem>>) attributes {dimension_semantics = [#tpu.dimension_semantics<parallel>], iteration_bounds = array<i64: 4>, scalar_prefetch = 0 : i64, scratch_operands = 0 : i64, tpu.core_type = #tpu.core_type<tc>, window_params = [{transform_indices = @transform_0, window_bounds = array<i64: 64, 16>}, {transform_indices = @transform_1, window_bounds = array<i64: 64, 1>}, {transform_indices = @transform_2, window_bounds = array<i64: 64, 1>}, {transform_indices = @transform_3, window_bounds = array<i64: 8, 128>}]} {
    %c0 = arith.constant 0 : index
    %c0_0 = arith.constant 0 : index
    %0 = vector.load %arg1[%c0, %c0_0] : memref<64x16xf32, #tpu.memory_space<vmem>>, vector<64x16xf32>
    %c0_1 = arith.constant 0 : index
    %c0_2 = arith.constant 0 : index
    %1 = vector.load %arg2[%c0_1, %c0_2] : memref<64x1xi32, #tpu.memory_space<vmem>>, vector<64x1xi32>
    %c0_3 = arith.constant 0 : index
    %c0_4 = arith.constant 0 : index
    %2 = vector.load %arg3[%c0_3, %c0_4] : memref<64x1xf32, #tpu.memory_space<vmem>>, vector<64x1xf32>
    %3 = tpu.iota {dimensions = array<i32: 1>} : vector<64x16xi32>
    %4 = vector.broadcast %1 : vector<64x1xi32> to vector<64x16xi32>
    %5 = arith.cmpi eq, %3, %4 : vector<64x16xi32>
    %cst = arith.constant 0.000000e+00 : f32
    %6 = vector.broadcast %cst : f32 to vector<64x16xf32>
    %7 = arith.select %5, %0, %6 : vector<64x16xi1>, vector<64x16xf32>
    %cst_5 = arith.constant dense<0.000000e+00> : vector<64xf32>
    %8 = vector.multi_reduction <add>, %7, %cst_5 [1] : vector<64x16xf32> to vector<64xf32>
    %9 = vector.shape_cast %8 : vector<64xf32> to vector<64x1xf32>
    %cst_6 = arith.constant dense<0xFF800000> : vector<64xf32>
    %10 = vector.multi_reduction <maximumf>, %0, %cst_6 [1] : vector<64x16xf32> to vector<64xf32>
    %11 = vector.shape_cast %10 : vector<64xf32> to vector<64x1xf32>
    %12 = vector.broadcast %11 : vector<64x1xf32> to vector<64x16xf32>
    %13 = arith.subf %0, %12 : vector<64x16xf32>
    %14 = math.exp %13 : vector<64x16xf32>
    %cst_7 = arith.constant dense<0.000000e+00> : vector<64xf32>
    %15 = vector.multi_reduction <add>, %14, %cst_7 [1] : vector<64x16xf32> to vector<64xf32>
    %16 = vector.shape_cast %15 : vector<64xf32> to vector<64x1xf32>
    %17 = math.log %16 : vector<64x1xf32>
    %18 = arith.addf %11, %17 : vector<64x1xf32>
    %19 = arith.subf %18, %9 : vector<64x1xf32>
    %cst_8 = arith.constant 0.000000e+00 : f32
    %20 = vector.broadcast %cst_8 : f32 to vector<64x1xf32>
    %21 = arith.subf %20, %19 : vector<64x1xf32>
    %22 = math.exp %21 : vector<64x1xf32>
    %cst_9 = arith.constant 1.000000e+00 : f32
    %23 = vector.broadcast %cst_9 : f32 to vector<64x1xf32>
    %24 = arith.subf %23, %22 : vector<64x1xf32>
    %cst_10 = arith.constant 0.000000e+00 : f32
    %25 = vector.broadcast %cst_10 : f32 to vector<64x1xf32>
    %26 = arith.maximumf %24, %25 : vector<64x1xf32>
    %27 = arith.mulf %26, %26 : vector<64x1xf32>
    %28 = arith.mulf %27, %26 : vector<64x1xf32>
    %29 = arith.mulf %2, %28 : vector<64x1xf32>
    %30 = arith.mulf %29, %19 : vector<64x1xf32>
    %31 = tpu.iota {dimensions = array<i32: 0>} : vector<64x1xi32>
    %c64_i32 = arith.constant 64 : i32
    %32 = arith.muli %arg0, %c64_i32 : i32
    %33 = vector.broadcast %32 : i32 to vector<64x1xi32>
    %34 = arith.addi %33, %31 : vector<64x1xi32>
    %c200_i32 = arith.constant 200 : i32
    %35 = vector.broadcast %c200_i32 : i32 to vector<64x1xi32>
    %36 = arith.cmpi slt, %34, %35 : vector<64x1xi32>
    %cst_11 = arith.constant 0.000000e+00 : f32
    %37 = vector.broadcast %cst_11 : f32 to vector<64x1xf32>
    %38 = arith.select %36, %30, %37 : vector<64x1xi1>, vector<64x1xf32>
    %39 = vector.shape_cast %38 : vector<64x1xf32> to vector<1x64x1xf32>
    %cst_12 = arith.constant dense<0.000000e+00> : vector<1xf32>
    %40 = vector.multi_reduction <add>, %39, %cst_12 [1, 2] : vector<1x64x1xf32> to vector<1xf32>
    %41 = vector.shape_cast %40 : vector<1xf32> to vector<1x1x1xf32>
    %42 = vector.extract %41[0, 0, 0] : f32 from vector<1x1x1xf32>
    %43 = vector.broadcast %42 : f32 to vector<8x128xf32>
    %c0_13 = arith.constant 0 : index
    %c0_14 = arith.constant 0 : index
    %44 = vector.load %arg4[%c0_13, %c0_14] : memref<8x128xf32, #tpu.memory_space<vmem>>, vector<8x128xf32>
    tpu.vector_store %arg4[%c0_13, %c0_14], %43 {strides = array<i32>} : memref<8x128xf32, #tpu.memory_space<vmem>>, vector<8x128xf32>,
    return
  }
  func.func @transform_0(%arg0: i32) -> (i32, i32) {
    %c0_i32 = arith.constant 0 : i32
    %c0_i32_0 = arith.constant 0 : i32
    return %arg0, %c0_i32 : i32, i32
  }
  func.func @transform_1(%arg0: i32) -> (i32, i32) {
    %c0_i32 = arith.constant 0 : i32
    %c0_i32_0 = arith.constant 0 : i32
    return %arg0, %c0_i32 : i32, i32
  }
  func.func @transform_2(%arg0: i32) -> (i32, i32) {
    %c0_i32 = arith.constant 0 : i32
    %c0_i32_0 = arith.constant 0 : i32
    return %arg0, %c0_i32 : i32, i32
  }
  func.func @transform_3(%arg0: i32) -> (i32, i32) {
    %c0_i32 = arith.constant 0 : i32
    %c0_i32_0 = arith.constant 0 : i32
    return %arg0, %c0_i32 : i32, i32
  }
}

</mosaic_0001>

<llo_original>
// kernel: tpu_custom_call.1
$region0: #{tpu_custom_call.1}
  #allocation0 [shape = 'u32[]', space=smem, size = 0x4, offset = 0x4, fixed_abs, tag = 'smem constant byte address 0x4 - core index']
  #allocation1 [shape = 'u32[144,128]{1,0:T(1,128)}', space=vmem, size = 0x12000, scoped, tag = 'internal scratch']
  %s0 = inlined_call_operand.vmem [shape: f32[200,16], index: 0, kind: input, shape index: {}]
  %s1 = inlined_call_operand.vmem [shape: s32[200,1], index: 1, kind: input, shape index: {}]
  %s2 = inlined_call_operand.vmem [shape: f32[200,1], index: 2, kind: input, shape index: {}]
  %s3 = inlined_call_operand.hbm [shape: f32[32,128], index: 3, kind: output, shape index: {}]
  %s4 = sld [smem:[#allocation0]]
  $region45: #{tpu_custom_call.1} parent=0
    _
  %s6 = ssub.s32 1, %s4
  %s7 = scalar_select 0, %s6, %s4
  $region1: #{tpu_custom_call.1} parent=0
    #allocation2 [shape = 'u8[8192]{0}', space=vmem, size = 0x2000, scoped, tag = 'output window, operand 0']
    #allocation3 [shape = 's32[2]{0}', space=sflag, size = 0x8, scoped, tag = 'scoped memory for tpu_custom_call.1']
    %8 = vsyncpa [#allocation3], 0
    %s9 = scalar_lea.sflag [#allocation3], 1
    %10 = vsyncpa %s9, 0
    loop: start=0, step=1, limit=6
    $region2: #{tpu_custom_call.1} parent=1 // loop_pre_header
      _
    $region3: #{tpu_custom_call.1} parent=1 // loop_header
      %s12 = sphi 0, %s16
      %p13 = scmp.ge.s32.totalorder %s12, 6
      %s22 = sphi 0, %s24
      %s25 = sphi 0, %s22
      %s26 = sphi 0, %s25
      %s42 = sphi 0, %s26
      %s48 = sphi 0, %s50
      %s51 = sphi 0, %s48
      %s52 = sphi 0, %s51
      %s68 = sphi 0, %s52
      %s74 = sphi 0, %s76
      %s77 = sphi 0, %s74
      %s78 = sphi 0, %s77
      %s94 = sphi 0, %s78
      %s100 = sphi 0, %s102
      %s103 = sphi 0, %s100
      %s104 = sphi 0, %s103
      %s120 = sphi 0, %s104
    $region4: #{tpu_custom_call.1} parent=1 // loop_header_branch
      %15 = sbr.rel (%p13) target = $region8
    $region5: #{tpu_custom_call.1} parent=1 // loop_body
      %s17 = ssub.s32 %s12, 1
      %s18 = ssub.s32 %s12, 2
      %s19 = sadd.s32 %s12, 1
      %s20 = ssub.s32 %s12, %s19
      %p21 = scmp.eq.s32.totalorder %s20, 0
      %s23 = sadd.s32 %s22, 1
      %s24 = scalar_select %p21, %s22, %s23
      %p27 = pneg %p21
      %p28 = scmp.eq.s32.totalorder %s12, 3
      %p29 = por %p27, %p28
      %p30 = scmp.ne.s32.totalorder %s22, %s25
      %p31 = scmp.eq.s32.totalorder %s12, 0
      %p32 = por %p30, %p31
      %p33 = scmp.ne.s32.totalorder %s22, %s25
      %p34 = scmp.eq.s32.totalorder %s17, 3
      %p35 = por %p33, %p34
      %p36 = scmp.ne.s32.totalorder %s25, %s26
      %p37 = scmp.eq.s32.totalorder %s17, 0
      %p38 = por %p36, %p37
      %p39 = scmp.ne.s32.totalorder %s25, %s26
      %p40 = scmp.eq.s32.totalorder %s18, 3
      %p41 = por %p39, %p40
      %p43 = scmp.ne.s32.totalorder %s26, %s42
      %p44 = scmp.eq.s32.totalorder %s18, 0
      %p45 = por %p43, %p44
      %s46 = ssub.s32 %s12, %s19
      %p47 = scmp.eq.s32.totalorder %s46, 0
      %s49 = sadd.s32 %s48, 1
      %s50 = scalar_select %p47, %s48, %s49
      %p53 = pneg %p47
      %p54 = scmp.eq.s32.totalorder %s12, 3
      %p55 = por %p53, %p54
      %p56 = scmp.ne.s32.totalorder %s48, %s51
      %p57 = scmp.eq.s32.totalorder %s12, 0
      %p58 = por %p56, %p57
      %p59 = scmp.ne.s32.totalorder %s48, %s51
      %p60 = scmp.eq.s32.totalorder %s17, 3
      %p61 = por %p59, %p60
      %p62 = scmp.ne.s32.totalorder %s51, %s52
      %p63 = scmp.eq.s32.totalorder %s17, 0
      %p64 = por %p62, %p63
      %p65 = scmp.ne.s32.totalorder %s51, %s52
      %p66 = scmp.eq.s32.totalorder %s18, 3
      %p67 = por %p65, %p66
      %p69 = scmp.ne.s32.totalorder %s52, %s68
      %p70 = scmp.eq.s32.totalorder %s18, 0
      %p71 = por %p69, %p70
      %s72 = ssub.s32 %s12, %s19
      %p73 = scmp.eq.s32.totalorder %s72, 0
      %s75 = sadd.s32 %s74, 1
      %s76 = scalar_select %p73, %s74, %s75
      %p79 = pneg %p73
      %p80 = scmp.eq.s32.totalorder %s12, 3
      %p81 = por %p79, %p80
      %p82 = scmp.ne.s32.totalorder %s74, %s77
      %p83 = scmp.eq.s32.totalorder %s12, 0
      %p84 = por %p82, %p83
      %p85 = scmp.ne.s32.totalorder %s74, %s77
      %p86 = scmp.eq.s32.totalorder %s17, 3
      %p87 = por %p85, %p86
      %p88 = scmp.ne.s32.totalorder %s77, %s78
      %p89 = scmp.eq.s32.totalorder %s17, 0
      %p90 = por %p88, %p89
      %p91 = scmp.ne.s32.totalorder %s77, %s78
      %p92 = scmp.eq.s32.totalorder %s18, 3
      %p93 = por %p91, %p92
      %p95 = scmp.ne.s32.totalorder %s78, %s94
      %p96 = scmp.eq.s32.totalorder %s18, 0
      %p97 = por %p95, %p96
      %s98 = ssub.s32 %s12, %s19
      %p99 = scmp.eq.s32.totalorder %s98, 0
      %s101 = sadd.s32 %s100, 1
      %s102 = scalar_select %p99, %s100, %s101
      %p105 = pneg %p99
      %p106 = scmp.eq.s32.totalorder %s12, 3
      %p107 = por %p105, %p106
      %p108 = scmp.ne.s32.totalorder %s100, %s103
      %p109 = scmp.eq.s32.totalorder %s12, 0
      %p110 = por %p108, %p109
      %p111 = scmp.ne.s32.totalorder %s100, %s103
      %p112 = scmp.eq.s32.totalorder %s17, 3
      %p113 = por %p111, %p112
      %p114 = scmp.ne.s32.totalorder %s103, %s104
      %p115 = scmp.eq.s32.totalorder %s17, 0
      %p116 = por %p114, %p115
      %p117 = scmp.ne.s32.totalorder %s103, %s104
      %p118 = scmp.eq.s32.totalorder %s18, 3
      %p119 = por %p117, %p118
      %p121 = scmp.ne.s32.totalorder %s104, %s120
      %p122 = scmp.eq.s32.totalorder %s18, 0
      %p123 = por %p121, %p122
      %p124 = scmp.le.s32.totalorder 1, %s12
      %p125 = scmp.lt.s32.totalorder %s12, 5
      %p126 = pnand %p124, %p125
      %p127 = pneg %p126
      // Predicated region
      $region9: #{tpu_custom_call.1} parent=5 // pred_check
        _
      $region10: #{tpu_custom_call.1} parent=5 // pred_check_branch
        %129 = sbr.rel (%p126) target = $region12
      $region11: #{tpu_custom_call.1} parent=5 // pred_region
        %s130 = ssub.s32 %s12, 1
      $region12: #{tpu_custom_call.1} parent=5 // pred_fallthru
        _
      %p131 = scmp.lt.s32.totalorder %s12, 4
      // Predicated region
      $region13: #{tpu_custom_call.1} parent=5 // pred_check
        %p132 = pneg %p131
      $region14: #{tpu_custom_call.1} parent=5 // pred_check_branch
        %134 = sbr.rel (%p132) target = $region16
      $region15: #{tpu_custom_call.1} parent=5 // pred_region
        // Predicated region
        $region17: #{tpu_custom_call.1} parent=15 // pred_check
          %p135 = pneg %p32
        $region18: #{tpu_custom_call.1} parent=15 // pred_check_branch
          %137 = sbr.rel (%p135) target = $region20
        $region19: #{tpu_custom_call.1} parent=15 // pred_region
          %s138 = smul.u32 8, %s12
          %s139 = ssub.s32 25, %s138
          %p140 = scmp.lt.s32.totalorder %s139, 8
          %s141 = scalar_select %p140, %s139, 8
          %s142 = smul.u32 128, %s141
          %p143 = scmp.lt.s32.totalorder %s138, 24
          %s144 = scalar_select %p143, %s138, 24
          %s145 = smul.addr %s144, 8
          %s146 = scalar_lea.vmem %s0, %s145
          %s147 = smul.u32 8, %s12
          %s148 = ssub.s32 25, %s147
          %p149 = scmp.lt.s32.totalorder %s148, 8
          %s150 = scalar_select %p149, %s148, 8
          %s151 = smul.u32 128, %s150
        $region20: #{tpu_custom_call.1} parent=15 // pred_fallthru
          _
        // Predicated region
        $region21: #{tpu_custom_call.1} parent=15 // pred_check
          %p152 = pneg %p58
        $region22: #{tpu_custom_call.1} parent=15 // pred_check_branch
          %154 = sbr.rel (%p152) target = $region24
        $region23: #{tpu_custom_call.1} parent=15 // pred_region
          %s155 = smul.u32 8, %s12
          %s156 = ssub.s32 25, %s155
          %p157 = scmp.lt.s32.totalorder %s156, 8
          %s158 = scalar_select %p157, %s156, 8
          %s159 = smul.u32 128, %s158
          %p160 = scmp.lt.s32.totalorder %s155, 24
          %s161 = scalar_select %p160, %s155, 24
          %s162 = smul.addr %s161, 8
          %s163 = scalar_lea.vmem %s1, %s162
          %s164 = smul.u32 8, %s12
          %s165 = ssub.s32 25, %s164
          %p166 = scmp.lt.s32.totalorder %s165, 8
          %s167 = scalar_select %p166, %s165, 8
          %s168 = smul.u32 128, %s167
        $region24: #{tpu_custom_call.1} parent=15 // pred_fallthru
          _
        // Predicated region
        $region25: #{tpu_custom_call.1} parent=15 // pred_check
          %p169 = pneg %p84
        $region26: #{tpu_custom_call.1} parent=15 // pred_check_branch
          %171 = sbr.rel (%p169) target = $region28
        $region27: #{tpu_custom_call.1} parent=15 // pred_region
          %s172 = smul.u32 8, %s12
          %s173 = ssub.s32 25, %s172
          %p174 = scmp.lt.s32.totalorder %s173, 8
          %s175 = scalar_select %p174, %s173, 8
          %s176 = smul.u32 128, %s175
          %p177 = scmp.lt.s32.totalorder %s172, 24
          %s178 = scalar_select %p177, %s172, 24
          %s179 = smul.addr %s178, 8
          %s180 = scalar_lea.vmem %s2, %s179
          %s181 = smul.u32 8, %s12
          %s182 = ssub.s32 25, %s181
          %p183 = scmp.lt.s32.totalorder %s182, 8
          %s184 = scalar_select %p183, %s182, 8
          %s185 = smul.u32 128, %s184
        $region28: #{tpu_custom_call.1} parent=15 // pred_fallthru
          _
      $region16: #{tpu_custom_call.1} parent=5 // pred_fallthru
        _
      %p186 = scmp.le.s32.totalorder 1, %s12
      %p187 = scmp.lt.s32.totalorder %s12, 5
      %p188 = pnand %p186, %p187
      %p189 = pneg %p188
      // Predicated region
      $region29: #{tpu_custom_call.1} parent=5 // pred_check
        _
      $region30: #{tpu_custom_call.1} parent=5 // pred_check_branch
        %191 = sbr.rel (%p188) target = $region32
      $region31: #{tpu_custom_call.1} parent=5 // pred_region
        %s192 = ssub.s32 %s12, 1
        %s193 = smul.u32 8, %s17
        %s194 = ssub.s32 25, %s193
        %p195 = scmp.lt.s32.totalorder %s194, 8
        %s196 = scalar_select %p195, %s194, 8
        %s197 = smul.u32 128, %s196
        %p198 = scmp.lt.s32.totalorder %s193, 24
        %s199 = scalar_select %p198, %s193, 24
        %s200 = smul.addr %s199, 8
        %s201 = scalar_lea.vmem %s0, %s200
        %p202 = pneg %p38
        %p203 = pneg %p35
        %s204 = smul.u32 8, %s17
        %s205 = ssub.s32 25, %s204
        %p206 = scmp.lt.s32.totalorder %s205, 8
        %s207 = scalar_select %p206, %s205, 8
        %s208 = smul.u32 128, %s207
        %p209 = scmp.lt.s32.totalorder %s204, 24
        %s210 = scalar_select %p209, %s204, 24
        %s211 = smul.addr %s210, 8
        %s212 = scalar_lea.vmem %s1, %s211
        %p213 = pneg %p64
        %p214 = pneg %p61
        %s215 = smul.u32 8, %s17
        %s216 = ssub.s32 25, %s215
        %p217 = scmp.lt.s32.totalorder %s216, 8
        %s218 = scalar_select %p217, %s216, 8
        %s219 = smul.u32 128, %s218
        %p220 = scmp.lt.s32.totalorder %s215, 24
        %s221 = scalar_select %p220, %s215, 24
        %s222 = smul.addr %s221, 8
        %s223 = scalar_lea.vmem %s2, %s222
        %p224 = pneg %p90
        %p225 = pneg %p87
        %p226 = pneg %p116
        %p227 = pneg %p113
        %s228 = sand.u32 %s103, 1
        %s229 = scalar_lea.sflag [#allocation3], %s228
        %s230 = sand.u32 %s103, 1
        %s231 = smul.addr %s230, 8
        %s232 = scalar_lea.vmem [#allocation2], %s231
        %s233 = smul.u32 8, %s17
        %s234 = ssub.s32 25, %s233
        %p235 = scmp.lt.s32.totalorder %s234, 8
        %s236 = scalar_select %p235, %s234, 8
        %s237 = smul.u32 128, %s236
        %p238 = scmp.lt.s32.totalorder %s233, 24
        %s239 = scalar_select %p238, %s233, 24
        %s240 = smul.addr %s239, 8
        %s241 = scalar_lea.vmem %s0, %s240
        %s242 = smul.u32 8, %s17
        %s243 = ssub.s32 25, %s242
        %p244 = scmp.lt.s32.totalorder %s243, 8
        %s245 = scalar_select %p244, %s243, 8
        %s246 = smul.u32 128, %s245
        %s247 = smul.u32 8, %s17
        %s248 = ssub.s32 25, %s247
        %p249 = scmp.lt.s32.totalorder %s248, 8
        %s250 = scalar_select %p249, %s248, 8
        %s251 = smul.u32 128, %s250
        %p252 = scmp.lt.s32.totalorder %s247, 24
        %s253 = scalar_select %p252, %s247, 24
        %s254 = smul.addr %s253, 8
        %s255 = scalar_lea.vmem %s1, %s254
        %s256 = smul.u32 8, %s17
        %s257 = ssub.s32 25, %s256
        %p258 = scmp.lt.s32.totalorder %s257, 8
        %s259 = scalar_select %p258, %s257, 8
        %s260 = smul.u32 128, %s259
        %s261 = smul.u32 8, %s17
        %s262 = ssub.s32 25, %s261
        %p263 = scmp.lt.s32.totalorder %s262, 8
        %s264 = scalar_select %p263, %s262, 8
        %s265 = smul.u32 128, %s264
        %p266 = scmp.lt.s32.totalorder %s261, 24
        %s267 = scalar_select %p266, %s261, 24
        %s268 = smul.addr %s267, 8
        %s269 = scalar_lea.vmem %s2, %s268
        %s270 = smul.u32 8, %s17
        %s271 = ssub.s32 25, %s270
        %p272 = scmp.lt.s32.totalorder %s271, 8
        %s273 = scalar_select %p272, %s271, 8
        %s274 = smul.u32 128, %s273
        %v275 = vld [vmem:[%s241] sm:$0xff]
        %v276 = vld [vmem:[%s241 + $0x8] sm:$0xff]
        %v277 = vld [vmem:[%s241 + $0x10] sm:$0xff]
        %v278 = vld [vmem:[%s241 + $0x18] sm:$0xff]
        %v279 = vld [vmem:[%s241 + $0x20] sm:$0xff]
        %v280 = vld [vmem:[%s241 + $0x28] sm:$0xff]
        %v281 = vld [vmem:[%s241 + $0x30] sm:$0xff]
        %v282 = vld [vmem:[%s241 + $0x38] sm:$0xff]
        %v283 = vld [vmem:[%s255] sm:$0xff]
        %v284 = vld [vmem:[%s255 + $0x8] sm:$0xff]
        %v285 = vld [vmem:[%s255 + $0x10] sm:$0xff]
        %v286 = vld [vmem:[%s255 + $0x18] sm:$0xff]
        %v287 = vld [vmem:[%s255 + $0x20] sm:$0xff]
        %v288 = vld [vmem:[%s255 + $0x28] sm:$0xff]
        %v289 = vld [vmem:[%s255 + $0x30] sm:$0xff]
        %v290 = vld [vmem:[%s255 + $0x38] sm:$0xff]
        %v291 = vld [vmem:[%s269] sm:$0xff]
        %v292 = vld [vmem:[%s269 + $0x8] sm:$0xff]
        %v293 = vld [vmem:[%s269 + $0x10] sm:$0xff]
        %v294 = vld [vmem:[%s269 + $0x18] sm:$0xff]
        %v295 = vld [vmem:[%s269 + $0x20] sm:$0xff]
        %v296 = vld [vmem:[%s269 + $0x28] sm:$0xff]
        %v297 = vld [vmem:[%s269 + $0x30] sm:$0xff]
        %v298 = vld [vmem:[%s269 + $0x38] sm:$0xff]
        %v299 = vlaneseq
        %v300 = vand.u32 %v299, 127
        %301 = vset.pattern.permute.xlu0 0
        %302 = vperm.xlu0 %301, %v283
        %v303 = vpop.permute.xlu0 %302
        %304 = vset.pattern.permute.xlu0 0
        %305 = vperm.xlu0 %304, %v284
        %v306 = vpop.permute.xlu0 %305
        %307 = vset.pattern.permute.xlu0 0
        %308 = vperm.xlu0 %307, %v285
        %v309 = vpop.permute.xlu0 %308
        %310 = vset.pattern.permute.xlu0 0
        %311 = vperm.xlu0 %310, %v286
        %v312 = vpop.permute.xlu0 %311
        %313 = vset.pattern.permute.xlu0 0
        %314 = vperm.xlu0 %313, %v287
        %v315 = vpop.permute.xlu0 %314
        %316 = vset.pattern.permute.xlu0 0
        %317 = vperm.xlu0 %316, %v288
        %v318 = vpop.permute.xlu0 %317
        %319 = vset.pattern.permute.xlu0 0
        %320 = vperm.xlu0 %319, %v289
        %v321 = vpop.permute.xlu0 %320
        %322 = vset.pattern.permute.xlu0 0
        %323 = vperm.xlu0 %322, %v290
        %v324 = vpop.permute.xlu0 %323
        %vm325 = vcmp.eq.s32.totalorder %v300, %v303
        %vm326 = vcmp.eq.s32.totalorder %v300, %v306
        %vm327 = vcmp.eq.s32.totalorder %v300, %v309
        %vm328 = vcmp.eq.s32.totalorder %v300, %v312
        %vm329 = vcmp.eq.s32.totalorder %v300, %v315
        %vm330 = vcmp.eq.s32.totalorder %v300, %v318
        %vm331 = vcmp.eq.s32.totalorder %v300, %v321
        %vm332 = vcmp.eq.s32.totalorder %v300, %v324
        %v333 = vsel %vm325, %v275, 0.0
        %v334 = vsel %vm326, %v276, 0.0
        %v335 = vsel %vm327, %v277, 0.0
        %v336 = vsel %vm328, %v278, 0.0
        %v337 = vsel %vm329, %v279, 0.0
        %v338 = vsel %vm330, %v280, 0.0
        %v339 = vsel %vm331, %v281, 0.0
        %v340 = vsel %vm332, %v282, 0.0
        %vm341 = vcmask 130048
        %v342 = vsel %vm341, %v333, 0.0
        %343 = vadd.xlane.f32.xlu0 %v342
        %v344 = vpop.xlane.xlu0 %343
        %v345 = vsel %vm341, %v334, 0.0
        %346 = vadd.xlane.f32.xlu0 %v345
        %v347 = vpop.xlane.xlu0 %346
        %v348 = vsel %vm341, %v335, 0.0
        %349 = vadd.xlane.f32.xlu0 %v348
        %v350 = vpop.xlane.xlu0 %349
        %v351 = vsel %vm341, %v336, 0.0
        %352 = vadd.xlane.f32.xlu0 %v351
        %v353 = vpop.xlane.xlu0 %352
        %v354 = vsel %vm341, %v337, 0.0
        %355 = vadd.xlane.f32.xlu0 %v354
        %v356 = vpop.xlane.xlu0 %355
        %v357 = vsel %vm341, %v338, 0.0
        %358 = vadd.xlane.f32.xlu0 %v357
        %v359 = vpop.xlane.xlu0 %358
        %v360 = vsel %vm341, %v339, 0.0
        %361 = vadd.xlane.f32.xlu0 %v360
        %v362 = vpop.xlane.xlu0 %361
        %v363 = vsel %vm341, %v340, 0.0
        %364 = vadd.xlane.f32.xlu0 %v363
        %v365 = vpop.xlane.xlu0 %364
        %v366 = vsel %vm341, %v275, -inf
        %367 = vmax.xlane.f32.xlu0 %v366
        %v368 = vpop.xlane.xlu0 %367
        %v369 = vsel %vm341, %v276, -inf
        %370 = vmax.xlane.f32.xlu0 %v369
        %v371 = vpop.xlane.xlu0 %370
        %v372 = vsel %vm341, %v277, -inf
        %373 = vmax.xlane.f32.xlu0 %v372
        %v374 = vpop.xlane.xlu0 %373
        %v375 = vsel %vm341, %v278, -inf
        %376 = vmax.xlane.f32.xlu0 %v375
        %v377 = vpop.xlane.xlu0 %376
        %v378 = vsel %vm341, %v279, -inf
        %379 = vmax.xlane.f32.xlu0 %v378
        %v380 = vpop.xlane.xlu0 %379
        %v381 = vsel %vm341, %v280, -inf
        %382 = vmax.xlane.f32.xlu0 %v381
        %v383 = vpop.xlane.xlu0 %382
        %v384 = vsel %vm341, %v281, -inf
        %385 = vmax.xlane.f32.xlu0 %v384
        %v386 = vpop.xlane.xlu0 %385
        %v387 = vsel %vm341, %v282, -inf
        %388 = vmax.xlane.f32.xlu0 %v387
        %v389 = vpop.xlane.xlu0 %388
        %v390 = vsub.f32 %v275, %v368
        %v391 = vsub.f32 %v276, %v371
        %v392 = vsub.f32 %v277, %v374
        %v393 = vsub.f32 %v278, %v377
        %v394 = vsub.f32 %v279, %v380
        %v395 = vsub.f32 %v280, %v383
        %v396 = vsub.f32 %v281, %v386
        %v397 = vsub.f32 %v282, %v389
        %v398 = vmul.f32 %v390, 1.442695
        %v399 = vpow.pop %v398
        %v400 = vmul.f32 %v391, 1.442695
        %v401 = vpow.pop %v400
        %v402 = vmul.f32 %v392, 1.442695
        %v403 = vpow.pop %v402
        %v404 = vmul.f32 %v393, 1.442695
        %v405 = vpow.pop %v404
        %v406 = vmul.f32 %v394, 1.442695
        %v407 = vpow.pop %v406
        %v408 = vmul.f32 %v395, 1.442695
        %v409 = vpow.pop %v408
        %v410 = vmul.f32 %v396, 1.442695
        %v411 = vpow.pop %v410
        %v412 = vmul.f32 %v397, 1.442695
        %v413 = vpow.pop %v412
        %v414 = vsel %vm341, %v399, 0.0
        %415 = vadd.xlane.f32.xlu0 %v414
        %v416 = vpop.xlane.xlu0 %415
        %v417 = vsel %vm341, %v401, 0.0
        %418 = vadd.xlane.f32.xlu0 %v417
        %v419 = vpop.xlane.xlu0 %418
        %v420 = vsel %vm341, %v403, 0.0
        %421 = vadd.xlane.f32.xlu0 %v420
        %v422 = vpop.xlane.xlu0 %421
        %v423 = vsel %vm341, %v405, 0.0
        %424 = vadd.xlane.f32.xlu0 %v423
        %v425 = vpop.xlane.xlu0 %424
        %v426 = vsel %vm341, %v407, 0.0
        %427 = vadd.xlane.f32.xlu0 %v426
        %v428 = vpop.xlane.xlu0 %427
        %v429 = vsel %vm341, %v409, 0.0
        %430 = vadd.xlane.f32.xlu0 %v429
        %v431 = vpop.xlane.xlu0 %430
        %v432 = vsel %vm341, %v411, 0.0
        %433 = vadd.xlane.f32.xlu0 %v432
        %v434 = vpop.xlane.xlu0 %433
        %v435 = vsel %vm341, %v413, 0.0
        %436 = vadd.xlane.f32.xlu0 %v435
        %v437 = vpop.xlane.xlu0 %436
        %v438 = vlog2.pop %v416
        %v439 = vmul.f32 %v438, 0.6931472
        %v440 = vlog2.pop %v419
        %v441 = vmul.f32 %v440, 0.6931472
        %v442 = vlog2.pop %v422
        %v443 = vmul.f32 %v442, 0.6931472
        %v444 = vlog2.pop %v425
        %v445 = vmul.f32 %v444, 0.6931472
        %v446 = vlog2.pop %v428
        %v447 = vmul.f32 %v446, 0.6931472
        %v448 = vlog2.pop %v431
        %v449 = vmul.f32 %v448, 0.6931472
        %v450 = vlog2.pop %v434
        %v451 = vmul.f32 %v450, 0.6931472
        %v452 = vlog2.pop %v437
        %v453 = vmul.f32 %v452, 0.6931472
        %v454 = vadd.f32 %v368, %v439
        %v455 = vadd.f32 %v371, %v441
        %v456 = vadd.f32 %v374, %v443
        %v457 = vadd.f32 %v377, %v445
        %v458 = vadd.f32 %v380, %v447
        %v459 = vadd.f32 %v383, %v449
        %v460 = vadd.f32 %v386, %v451
        %v461 = vadd.f32 %v389, %v453
        %v462 = vsub.f32 %v454, %v344
        %v463 = vsub.f32 %v455, %v347
        %v464 = vsub.f32 %v456, %v350
        %v465 = vsub.f32 %v457, %v353
        %v466 = vsub.f32 %v458, %v356
        %v467 = vsub.f32 %v459, %v359
        %v468 = vsub.f32 %v460, %v362
        %v469 = vsub.f32 %v461, %v365
        %v470 = vsub.f32 0.0, %v462
        %v471 = vsub.f32 0.0, %v463
        %v472 = vsub.f32 0.0, %v464
        %v473 = vsub.f32 0.0, %v465
        %v474 = vsub.f32 0.0, %v466
        %v475 = vsub.f32 0.0, %v467
        %v476 = vsub.f32 0.0, %v468
        %v477 = vsub.f32 0.0, %v469
        %v478 = vmul.f32 %v470, 1.442695
        %v479 = vpow.pop %v478
        %v480 = vmul.f32 %v471, 1.442695
        %v481 = vpow.pop %v480
        %v482 = vmul.f32 %v472, 1.442695
        %v483 = vpow.pop %v482
        %v484 = vmul.f32 %v473, 1.442695
        %v485 = vpow.pop %v484
        %v486 = vmul.f32 %v474, 1.442695
        %v487 = vpow.pop %v486
        %v488 = vmul.f32 %v475, 1.442695
        %v489 = vpow.pop %v488
        %v490 = vmul.f32 %v476, 1.442695
        %v491 = vpow.pop %v490
        %v492 = vmul.f32 %v477, 1.442695
        %v493 = vpow.pop %v492
        %v494 = vsub.f32 1.0, %v479
        %v495 = vsub.f32 1.0, %v481
        %v496 = vsub.f32 1.0, %v483
        %v497 = vsub.f32 1.0, %v485
        %v498 = vsub.f32 1.0, %v487
        %v499 = vsub.f32 1.0, %v489
        %v500 = vsub.f32 1.0, %v491
        %v501 = vsub.f32 1.0, %v493
        %v502 = vmax.f32 %v494, 0.0
        %v503 = vmax.f32 %v495, 0.0
        %v504 = vmax.f32 %v496, 0.0
        %v505 = vmax.f32 %v497, 0.0
        %v506 = vmax.f32 %v498, 0.0
        %v507 = vmax.f32 %v499, 0.0
        %v508 = vmax.f32 %v500, 0.0
        %v509 = vmax.f32 %v501, 0.0
        %v510 = vmul.f32 %v502, %v502
        %v511 = vmul.f32 %v503, %v503
        %v512 = vmul.f32 %v504, %v504
        %v513 = vmul.f32 %v505, %v505
        %v514 = vmul.f32 %v506, %v506
        %v515 = vmul.f32 %v507, %v507
        %v516 = vmul.f32 %v508, %v508
        %v517 = vmul.f32 %v509, %v509
        %v518 = vmul.f32 %v510, %v502
        %v519 = vmul.f32 %v511, %v503
        %v520 = vmul.f32 %v512, %v504
        %v521 = vmul.f32 %v513, %v505
        %v522 = vmul.f32 %v514, %v506
        %v523 = vmul.f32 %v515, %v507
        %v524 = vmul.f32 %v516, %v508
        %v525 = vmul.f32 %v517, %v509
        %v526 = vmul.f32 %v291, %v518
        %v527 = vmul.f32 %v292, %v519
        %v528 = vmul.f32 %v293, %v520
        %v529 = vmul.f32 %v294, %v521
        %v530 = vmul.f32 %v295, %v522
        %v531 = vmul.f32 %v296, %v523
        %v532 = vmul.f32 %v297, %v524
        %v533 = vmul.f32 %v298, %v525
        %v534 = vmul.f32 %v526, %v462
        %v535 = vmul.f32 %v527, %v463
        %v536 = vmul.f32 %v528, %v464
        %v537 = vmul.f32 %v529, %v465
        %v538 = vmul.f32 %v530, %v466
        %v539 = vmul.f32 %v531, %v467
        %v540 = vmul.f32 %v532, %v468
        %v541 = vmul.f32 %v533, %v469
        %v542 = vlaneseq
        %v543 = vshrl.u32 %v542, 7
        %v544 = vadd.s32 %v543, 8
        %v545 = vadd.s32 %v543, 16
        %v546 = vadd.s32 %v543, 24
        %v547 = vadd.s32 %v543, 32
        %v548 = vadd.s32 %v543, 40
        %v549 = vadd.s32 %v543, 48
        %v550 = vadd.s32 %v543, 56
        %s551 = smul.u32 %s17, 64
        %v552 = vstv %s551
        %v553 = vadd.s32 %v552, %v543
        %v554 = vadd.s32 %v552, %v544
        %v555 = vadd.s32 %v552, %v545
        %v556 = vadd.s32 %v552, %v546
        %v557 = vadd.s32 %v552, %v547
        %v558 = vadd.s32 %v552, %v548
        %v559 = vadd.s32 %v552, %v549
        %v560 = vadd.s32 %v552, %v550
        %vm561 = vcmp.lt.s32.totalorder %v553, 200
        %vm562 = vcmp.lt.s32.totalorder %v554, 200
        %vm563 = vcmp.lt.s32.totalorder %v555, 200
        %vm564 = vcmp.lt.s32.totalorder %v556, 200
        %vm565 = vcmp.lt.s32.totalorder %v557, 200
        %vm566 = vcmp.lt.s32.totalorder %v558, 200
        %vm567 = vcmp.lt.s32.totalorder %v559, 200
        %vm568 = vcmp.lt.s32.totalorder %v560, 200
        %v569 = vsel %vm561, %v534, 0.0
        %v570 = vsel %vm562, %v535, 0.0
        %v571 = vsel %vm563, %v536, 0.0
        %v572 = vsel %vm564, %v537, 0.0
        %v573 = vsel %vm565, %v538, 0.0
        %v574 = vsel %vm566, %v539, 0.0
        %v575 = vsel %vm567, %v540, 0.0
        %v576 = vsel %vm568, %v541, 0.0
        %vm577 = vcmask 7168
        %v578 = vsel %vm577, %v569, 0.0
        %v579 = vsel %vm577, %v570, 0.0
        %v580 = vadd.f32 %v578, %v579
        %v581 = vsel %vm577, %v571, 0.0
        %v582 = vadd.f32 %v580, %v581
        %v583 = vsel %vm577, %v572, 0.0
        %v584 = vadd.f32 %v582, %v583
        %v585 = vsel %vm577, %v573, 0.0
        %v586 = vadd.f32 %v584, %v585
        %v587 = vsel %vm577, %v574, 0.0
        %v588 = vadd.f32 %v586, %v587
        %v589 = vsel %vm577, %v575, 0.0
        %v590 = vadd.f32 %v588, %v589
        %v591 = vsel %vm577, %v576, 0.0
        %v592 = vadd.f32 %v590, %v591
        %593 = vadd.xlane.f32.xlu0 %v592
        %v594 = vpop.xlane.xlu0 %593
        %v595 = vrot.slane %v594, 4
        %v596 = vadd.f32 %v594, %v595
        %v597 = vrot.slane %v596, 2
        %v598 = vadd.f32 %v596, %v597
        %v599 = vrot.slane %v598, 1
        %v600 = vadd.f32 %v598, %v599
        %s601 = vtos %v600
        %v602 = vstv %s601
        %603 = vst [vmem:[%s232] sm:$0xff] %v602
        %s604 = sand.u32 %s103, 1
        %s605 = scalar_lea.sflag [#allocation3], %s604
        %s606 = sand.u32 %s103, 1
        %s607 = smul.addr %s606, 8
        %s608 = scalar_lea.vmem [#allocation2], %s607
        // Predicated region
        $region33: #{tpu_custom_call.1} parent=31 // pred_check
          %p609 = pneg %p113
        $region34: #{tpu_custom_call.1} parent=31 // pred_check_branch
          %611 = sbr.rel (%p609) target = $region36
        $region35: #{tpu_custom_call.1} parent=31 // pred_region
          %s613 = ssub.s32 128, 128
          %614 = vsyncadd %s605, %s613
          %s615 = smul.addr %s17, 128
          %s616 = scalar_lea.hbm %s3, %s615
          %s618 = sshll.u32 %s608, 4
          %s619 = int_to_ptr.vmem [resolvable:$true] %s618
          %621 = dma.vmem_to_hbm [thread:$0]  %s619, 128, %s616, %s605
        $region36: #{tpu_custom_call.1} parent=31 // pred_fallthru
          _
      $region32: #{tpu_custom_call.1} parent=5 // pred_fallthru
        _
      %p622 = scmp.le.s32.totalorder 2, %s12
      // Predicated region
      $region37: #{tpu_custom_call.1} parent=5 // pred_check
        %p623 = pneg %p622
      $region38: #{tpu_custom_call.1} parent=5 // pred_check_branch
        %625 = sbr.rel (%p623) target = $region40
      $region39: #{tpu_custom_call.1} parent=5 // pred_region
        %s626 = ssub.s32 %s12, 2
        // Predicated region
        $region41: #{tpu_custom_call.1} parent=39 // pred_check
          %p627 = pneg %p119
        $region42: #{tpu_custom_call.1} parent=39 // pred_check_branch
          %629 = sbr.rel (%p627) target = $region44
        $region43: #{tpu_custom_call.1} parent=39 // pred_region
          %s630 = sand.u32 %s104, 1
          %s631 = scalar_lea.sflag [#allocation3], %s630
          %s632 = sand.u32 %s104, 1
          %s633 = smul.addr %s632, 8
          %s634 = scalar_lea.vmem [#allocation2], %s633
          %635 = dma.done %s631, 128
        $region44: #{tpu_custom_call.1} parent=39 // pred_fallthru
          _
      $region40: #{tpu_custom_call.1} parent=5 // pred_fallthru
        _
    $region6: #{tpu_custom_call.1} parent=1 // loop_footer
      %s16 = sadd.s32 1, %s12
    $region7: #{tpu_custom_call.1} parent=1 // loop_footer_branch
      %11 = sbr.rel target = $region3
    $region8: #{tpu_custom_call.1} parent=1 // loop_exit
      _
    %636 = vsyncpa [#allocation3], 1
    %s637 = scalar_lea.sflag [#allocation3], 1
    %638 = vsyncpa %s637, 1

</llo_original>
